<compile_context>
chip_gen: v6e
topology: v6e:2x2x1
jax: 0.10.0
libtpu: 0.0.40
codegen_flags: <defaults>
</compile_context>

<pallas_src>
import jax
import jax.numpy as jnp
from jax import lax
from jax.experimental import pallas as pl
from jax.experimental.pallas import tpu as pltpu


def _round_up(x, m):
    return ((x + m - 1) // m) * m


# ----------------------------- Pallas kernel ------------------------------ #

def _frame_block_kernel(patch_ref, w_ref, o_ref):
    """One grid step = TN frames.

    patch_ref: (TN, P, Kp)   bf16 im2col patches (K zero-padded to Kp)
    w_ref    : (Kp, C_out)   bf16 flattened, zero-padded stem-conv weight
    o_ref    : (TN, C_out)   f32 pooled per-frame features
    """
    tn, p, kp = patch_ref.shape
    c_out = o_ref.shape[-1]
    # One big MXU matmul for the whole frame block (M = TN*P >= 256).
    patches = patch_ref[...].reshape(tn * p, kp)
    h = jnp.dot(patches, w_ref[...],
                preferred_element_type=jnp.float32)        # f32 accumulation
    h = jnp.maximum(h, 0.0)                                # ReLU (f32, VPU)
    # Global average pool per frame: cross-sublane reduce (XLU) + static scale.
    pooled = jnp.sum(h.reshape(tn, p, c_out), axis=1) * (1.0 / p)
    o_ref[...] = pooled.astype(o_ref.dtype)


def _choose_tn(p, kp, itemsize=2, vmem_budget_bytes=8 << 20):
    """Frames per grid step: M = tn*p >= 256 for the MXU, tn a multiple of 8
    for a sublane-dense output block, capped by a double-buffered input-block
    VMEM budget (conservative for v7x's 64 MiB physical / 32 MiB scoped)."""
    tn = _round_up(max(8, pl.cdiv(256, p)), 8)
    while tn > 8 and 2 * tn * p * kp * itemsize > vmem_budget_bytes:
        tn -= 8
    return tn


def _frame_features_pallas(patches, w_mat, tn):
    """patches: (N, P, Kp) bf16, w_mat: (Kp, C_out) bf16 -> (N, C_out) f32.

    N must be a multiple of tn; Kp must be a multiple of 128.
    """
    n, p, kp = patches.shape
    c_out = w_mat.shape[1]
    return pl.pallas_call(
        _frame_block_kernel,
        out_shape=jax.ShapeDtypeStruct((n, c_out), jnp.float32),
        grid_spec=pltpu.PrefetchScalarGridSpec(
            num_scalar_prefetch=0,
            grid=(n // tn,),
            in_specs=[
                pl.BlockSpec((tn, p, kp), lambda i: (i, 0, 0)),
                pl.BlockSpec((kp, c_out), lambda i: (0, 0)),   # resident weight
            ],
            # Sublane-dense (TN, C_out) output slab per step.
            out_specs=pl.BlockSpec((tn, c_out), lambda i: (i, 0)),
        ),
        compiler_params=pltpu.CompilerParams(
            # Frame-block axis is independent -> TC-shardable (v7x megacore).
            dimension_semantics=("parallel",)),
    )(patches, w_mat)


# ----------------------------- JAX glue ----------------------------------- #

def _im2col(x_nchw, kh, kw, stride, pad):
    """x_nchw: (N, C, H, W) -> (N, H_out*W_out, C*kh*kw), ordering matches
    weight.reshape(C_out, C*kh*kw)."""
    n, c, h, w = x_nchw.shape
    h_out = (h + 2 * pad - kh) // stride + 1
    w_out = (w + 2 * pad - kw) // stride + 1
    xp = jnp.pad(x_nchw, ((0, 0), (0, 0), (pad, pad), (pad, pad)))
    cols = []
    for i in range(kh):
        for j in range(kw):
            cols.append(xp[:, :, i:i + stride * h_out:stride,
                           j:j + stride * w_out:stride])      # (N,C,Ho,Wo)
    p = jnp.stack(cols, axis=2)                               # (N,C,kh*kw,Ho,Wo)
    p = jnp.transpose(p, (0, 3, 4, 1, 2))                     # (N,Ho,Wo,C,kh*kw)
    return p.reshape(n, h_out * w_out, c * kh * kw), h_out, w_out


class E2EModelPallas:
    """Synthetic stand-in for E2EModel(feature_arch='rn18', modality='rgb')."""

    def __init__(self, in_channels=3, stem_channels=64, key=None):
        self.kh = self.kw = 7
        self.stride = 2
        self.pad = 3
        self.in_channels = in_channels
        self.feat_dim = stem_channels
        self._require_clip_len = -1  # no _tsm / _gsm suffix
        if key is None:
            key = jax.random.PRNGKey(42)
        fan_in = in_channels * self.kh * self.kw
        # Deterministic He-style init of the (bias-free) stem conv.
        self.w_conv = (jax.random.normal(
            key, (stem_channels, in_channels, self.kh, self.kw),
            dtype=jnp.float32) * jnp.sqrt(2.0 / fan_in))

    def __call__(self, x):
        # x: (B, C, T, H, W)  -- same convention as the PyTorch module.
        b, c, t, h, w = x.shape
        x = jnp.transpose(x, (0, 2, 1, 3, 4))                 # (B, T, C, H, W)
        clip_len = t
        # _require_clip_len <= 0 -> no temporal padding branch.
        frames = x.reshape(b * clip_len, c, h, w)             # (N, C, H, W)
        # TODO(synk): im2col is materialized in HBM by XLA; fusing the 49
        # shifted-window gathers into the kernel via manual DMA would roughly
        # halve HBM traffic at realistic frame sizes.
        patches, _, _ = _im2col(frames, self.kh, self.kw, self.stride, self.pad)
        n, p, k = patches.shape

        # Pad contraction dim K = C*kh*kw up to a multiple of 256 so the lane
        # axis of patches / sublane axis of the weight are (8,128)-aligned and
        # match the 256-wide MXU contraction on v6e/v7x (zeros are inert).
        kp = _round_up(k, 256)
        tn = _choose_tn(p, kp)
        n_pad = _round_up(n, tn)                              # frame-tile pad
        patches = jnp.pad(patches, ((0, n_pad - n), (0, 0), (0, kp - k)))
        w_mat = jnp.pad(self.w_conv.reshape(self.feat_dim, -1).T,
                        ((0, kp - k), (0, 0)))                # (Kp, C_out)

        # bf16 inputs: halve HBM bytes + double MXU rate; accumulation is f32.
        feats = _frame_features_pallas(patches.astype(jnp.bfloat16),
                                       w_mat.astype(jnp.bfloat16), tn)
        feats = feats[:n]                                     # drop frame pad
        return feats.reshape(b, clip_len, self.feat_dim)

    def reference(self, x):
        """Pure-JAX f32 reference of the same forward (correctness check)."""
        b, c, t, h, w = x.shape
        frames = jnp.transpose(x, (0, 2, 1, 3, 4)).reshape(b * t, c, h, w)
        y = lax.conv_general_dilated(
            frames, self.w_conv, window_strides=(self.stride, self.stride),
            padding=((self.pad, self.pad), (self.pad, self.pad)),
            dimension_numbers=("NCHW", "OIHW", "NCHW"))
        y = jax.nn.relu(y)
        pooled = jnp.mean(y, axis=(2, 3))
        return pooled.reshape(b, t, self.feat_dim)


if __name__ == "__main__":
    key = jax.random.PRNGKey(0)
    k_x, k_w = jax.random.split(key)

    B, C, T, H, W = 2, 3, 4, 16, 16            # small rgb clip
    x = jax.random.normal(k_x, (B, C, T, H, W), dtype=jnp.float32)

    model = E2EModelPallas(in_channels=C, stem_channels=64, key=k_w)

    out = model(x)
    out = jax.block_until_ready(out)
    assert out.shape == (B, T, model.feat_dim), out.shape

    ref = jax.block_until_ready(model.reference(x))
    # bf16 inputs (f32 accumulation) -> loosened tolerance vs f32 reference.
    assert jnp.allclose(out, ref, atol=3e-2, rtol=3e-2), (
        float(jnp.max(jnp.abs(out - ref))))

    print("KERNEL_OK")
</pallas_src>

<mosaic_0001>
module attributes {stable_mosaic.version = 11 : i64} {
  func.func @_frame_block_kernel(%arg0: i32, %arg1: memref<8x64x256xbf16, #tpu.memory_space<vmem>>, %arg2: memref<256x64xbf16, #tpu.memory_space<vmem>>, %arg3: memref<8x64xf32, #tpu.memory_space<vmem>>) attributes {dimension_semantics = [#tpu.dimension_semantics<parallel>], iteration_bounds = array<i64: 1>, scalar_prefetch = 0 : i64, scratch_operands = 0 : i64, tpu.core_type = #tpu.core_type<tc>, window_params = [{transform_indices = @transform_0, window_bounds = array<i64: 8, 64, 256>}, {pipeline_mode = #tpu.pipeline_mode<synchronous>, transform_indices = @transform_1, window_bounds = array<i64: 256, 64>}, {transform_indices = @transform_2, window_bounds = array<i64: 8, 64>}]} {
    %c0 = arith.constant 0 : index
    %c0_0 = arith.constant 0 : index
    %c0_1 = arith.constant 0 : index
    %0 = vector.load %arg1[%c0, %c0_0, %c0_1] : memref<8x64x256xbf16, #tpu.memory_space<vmem>>, vector<8x64x256xbf16>
    %1 = vector.shape_cast %0 : vector<8x64x256xbf16> to vector<512x256xbf16>
    %c0_2 = arith.constant 0 : index
    %c0_3 = arith.constant 0 : index
    %2 = vector.load %arg2[%c0_2, %c0_3] : memref<256x64xbf16, #tpu.memory_space<vmem>>, vector<256x64xbf16>
    %cst = arith.constant dense<0.000000e+00> : vector<512x64xf32>
    %3 = tpu.matmul %1, %2, %cst {dimension_numbers = #tpu.dot_dimension_numbers<[1], [0], [0], [1], [0, 0, 1, 1], [], []>} : vector<512x256xbf16>, vector<256x64xbf16>, vector<512x64xf32> -> vector<512x64xf32>
    %cst_4 = arith.constant 0.000000e+00 : f32
    %4 = vector.broadcast %cst_4 : f32 to vector<512x64xf32>
    %5 = arith.maximumf %3, %4 : vector<512x64xf32>
    %6 = vector.shape_cast %5 : vector<512x64xf32> to vector<8x64x64xf32>
    %cst_5 = arith.constant dense<0.000000e+00> : vector<8x64xf32>
    %7 = vector.multi_reduction <add>, %6, %cst_5 [1] : vector<8x64x64xf32> to vector<8x64xf32>
    %cst_6 = arith.constant 1.562500e-02 : f32
    %8 = vector.broadcast %cst_6 : f32 to vector<8x64xf32>
    %9 = arith.mulf %7, %8 : vector<8x64xf32>
    %c0_7 = arith.constant 0 : index
    %c0_8 = arith.constant 0 : index
    %10 = vector.load %arg3[%c0_7, %c0_8] : memref<8x64xf32, #tpu.memory_space<vmem>>, vector<8x64xf32>
    tpu.vector_store %arg3[%c0_7, %c0_8], %9 {strides = array<i32>} : memref<8x64xf32, #tpu.memory_space<vmem>>, vector<8x64xf32>,
    return
  }
  func.func @transform_0(%arg0: i32) -> (i32, i32, i32) {
    %c0_i32 = arith.constant 0 : i32
    %c0_i32_0 = arith.constant 0 : i32
    %c0_i32_1 = arith.constant 0 : i32
    return %arg0, %c0_i32, %c0_i32_0 : i32, i32, i32
  }
  func.func @transform_1(%arg0: i32) -> (i32, i32) {
    %c0_i32 = arith.constant 0 : i32
    %c0_i32_0 = arith.constant 0 : i32
    %c0_i32_1 = arith.constant 0 : i32
    return %c0_i32, %c0_i32_0 : i32, i32
  }
  func.func @transform_2(%arg0: i32) -> (i32, i32) {
    %c0_i32 = arith.constant 0 : i32
    %c0_i32_0 = arith.constant 0 : i32
    return %arg0, %c0_i32 : i32, i32
  }
}

</mosaic_0001>

<llo_original>
// kernel: tpu_custom_call.1
$region0: #{tpu_custom_call.1}
  #allocation0 [shape = 'u32[]', space=smem, size = 0x4, offset = 0x4, fixed_abs, tag = 'smem constant byte address 0x4 - core index']
  #allocation1 [shape = 'u32[144,128]{1,0:T(1,128)}', space=vmem, size = 0x12000, scoped, tag = 'internal scratch']
  %s0 = inlined_call_operand.hbm [shape: bf16[8,64,256], index: 0, kind: input, shape index: {}]
  %s1 = inlined_call_operand.vmem [shape: bf16[256,64], index: 1, kind: input, shape index: {}]
  %s2 = inlined_call_operand.hbm [shape: f32[8,64], index: 2, kind: output, shape index: {}]
  %s3 = sld [smem:[#allocation0]]
  $region22: #{tpu_custom_call.1} parent=0
    _
  %s5 = ssub.s32 1, %s3
  %s6 = scalar_select 0, %s5, %s3
  $region1: #{tpu_custom_call.1} parent=0
    #allocation2 [shape = 'u8[262144]{0}', space=vmem, size = 0x40000, scoped, tag = 'input window, operand 0, single buffered']
    #allocation3 [shape = 's32[1]{0}', space=sflag, size = 0x4, scoped, tag = 'scoped memory for tpu_custom_call.1']
    #allocation4 [shape = 's32[1]{0}', space=sflag, size = 0x4, scoped, tag = 'scoped memory for tpu_custom_call.1']
    #allocation5 [shape = 'u8[4096]{0}', space=vmem, size = 0x1000, scoped, tag = 'output window, operand 0, single buffered']
    %7 = vsyncpa [#allocation3], 0
    %8 = vsyncpa [#allocation4], 0
    // Predicated region
    $region2: #{tpu_custom_call.1} parent=1 // pred_check
      _
    $region3: #{tpu_custom_call.1} parent=1 // pred_check_branch
      %10 = sbr.rel (0) target = $region5
    $region4: #{tpu_custom_call.1} parent=1 // pred_region
      %s12 = ssub.s32 8192, 8192
      %13 = vsyncadd [#allocation3], %s12
      %s14 = sshll.u32 [#allocation2], 4
      %s15 = int_to_ptr.vmem [resolvable:$true] %s14
      %20 = dma.hbm_to_vmem [thread:$0]  %s0, 8192, %s15, [#allocation3], 128, 128, 8
    $region5: #{tpu_custom_call.1} parent=1 // pred_fallthru
      _
    // Predicated region
    $region6: #{tpu_custom_call.1} parent=1 // pred_check
      _
    $region7: #{tpu_custom_call.1} parent=1 // pred_check_branch
      %22 = sbr.rel (0) target = $region9
    $region8: #{tpu_custom_call.1} parent=1 // pred_region
      _
    $region9: #{tpu_custom_call.1} parent=1 // pred_fallthru
      _
    // Predicated region
    $region10: #{tpu_custom_call.1} parent=1 // pred_check
      _
    $region11: #{tpu_custom_call.1} parent=1 // pred_check_branch
      %24 = sbr.rel (0) target = $region13
    $region12: #{tpu_custom_call.1} parent=1 // pred_region
      %25 = dma.done [#allocation3], 8192
    $region13: #{tpu_custom_call.1} parent=1 // pred_fallthru
      _
    %v27 = vld [vmem:[#allocation2] sm:$0xff]
    %v28 = vld [vmem:[#allocation2 + $0x8] sm:$0xff]
    %v29 = vld [vmem:[#allocation2 + $0x10] sm:$0xff]
    %v30 = vld [vmem:[#allocation2 + $0x18] sm:$0xff]
    %v31 = vld [vmem:[#allocation2 + $0x20] sm:$0xff]
    %v32 = vld [vmem:[#allocation2 + $0x28] sm:$0xff]
    %v33 = vld [vmem:[#allocation2 + $0x30] sm:$0xff]
    %v34 = vld [vmem:[#allocation2 + $0x38] sm:$0xff]
    %v35 = vld [vmem:[#allocation2 + $0x40] sm:$0xff]
    %v36 = vld [vmem:[#allocation2 + $0x48] sm:$0xff]
    %v37 = vld [vmem:[#allocation2 + $0x50] sm:$0xff]
    %v38 = vld [vmem:[#allocation2 + $0x58] sm:$0xff]
    %v39 = vld [vmem:[#allocation2 + $0x60] sm:$0xff]
    %v40 = vld [vmem:[#allocation2 + $0x68] sm:$0xff]
    %v41 = vld [vmem:[#allocation2 + $0x70] sm:$0xff]
    %v42 = vld [vmem:[#allocation2 + $0x78] sm:$0xff]
    %v43 = vld [vmem:[#allocation2 + $0x80] sm:$0xff]
    %v44 = vld [vmem:[#allocation2 + $0x88] sm:$0xff]
    %v45 = vld [vmem:[#allocation2 + $0x90] sm:$0xff]
    %v46 = vld [vmem:[#allocation2 + $0x98] sm:$0xff]
    %v47 = vld [vmem:[#allocation2 + $0xa0] sm:$0xff]
    %v48 = vld [vmem:[#allocation2 + $0xa8] sm:$0xff]
    %v49 = vld [vmem:[#allocation2 + $0xb0] sm:$0xff]
    %v50 = vld [vmem:[#allocation2 + $0xb8] sm:$0xff]
    %v51 = vld [vmem:[#allocation2 + $0xc0] sm:$0xff]
    %v52 = vld [vmem:[#allocation2 + $0xc8] sm:$0xff]
    %v53 = vld [vmem:[#allocation2 + $0xd0] sm:$0xff]
    %v54 = vld [vmem:[#allocation2 + $0xd8] sm:$0xff]
    %v55 = vld [vmem:[#allocation2 + $0xe0] sm:$0xff]
    %v56 = vld [vmem:[#allocation2 + $0xe8] sm:$0xff]
    %v57 = vld [vmem:[#allocation2 + $0xf0] sm:$0xff]
    %v58 = vld [vmem:[#allocation2 + $0xf8] sm:$0xff]
    %v59 = vld [vmem:[#allocation2 + $0x100] sm:$0xff]
    %v60 = vld [vmem:[#allocation2 + $0x108] sm:$0xff]
    %v61 = vld [vmem:[#allocation2 + $0x110] sm:$0xff]
    %v62 = vld [vmem:[#allocation2 + $0x118] sm:$0xff]
    %v63 = vld [vmem:[#allocation2 + $0x120] sm:$0xff]
    %v64 = vld [vmem:[#allocation2 + $0x128] sm:$0xff]
    %v65 = vld [vmem:[#allocation2 + $0x130] sm:$0xff]
    %v66 = vld [vmem:[#allocation2 + $0x138] sm:$0xff]
    %v67 = vld [vmem:[#allocation2 + $0x140] sm:$0xff]
    %v68 = vld [vmem:[#allocation2 + $0x148] sm:$0xff]
    %v69 = vld [vmem:[#allocation2 + $0x150] sm:$0xff]
    %v70 = vld [vmem:[#allocation2 + $0x158] sm:$0xff]
    %v71 = vld [vmem:[#allocation2 + $0x160] sm:$0xff]
    %v72 = vld [vmem:[#allocation2 + $0x168] sm:$0xff]
    %v73 = vld [vmem:[#allocation2 + $0x170] sm:$0xff]
    %v74 = vld [vmem:[#allocation2 + $0x178] sm:$0xff]
    %v75 = vld [vmem:[#allocation2 + $0x180] sm:$0xff]
    %v76 = vld [vmem:[#allocation2 + $0x188] sm:$0xff]
    %v77 = vld [vmem:[#allocation2 + $0x190] sm:$0xff]
    %v78 = vld [vmem:[#allocation2 + $0x198] sm:$0xff]
    %v79 = vld [vmem:[#allocation2 + $0x1a0] sm:$0xff]
    %v80 = vld [vmem:[#allocation2 + $0x1a8] sm:$0xff]
    %v81 = vld [vmem:[#allocation2 + $0x1b0] sm:$0xff]
    %v82 = vld [vmem:[#allocation2 + $0x1b8] sm:$0xff]
    %v83 = vld [vmem:[#allocation2 + $0x1c0] sm:$0xff]
    %v84 = vld [vmem:[#allocation2 + $0x1c8] sm:$0xff]
    %v85 = vld [vmem:[#allocation2 + $0x1d0] sm:$0xff]
    %v86 = vld [vmem:[#allocation2 + $0x1d8] sm:$0xff]
    %v87 = vld [vmem:[#allocation2 + $0x1e0] sm:$0xff]
    %v88 = vld [vmem:[#allocation2 + $0x1e8] sm:$0xff]
    %v89 = vld [vmem:[#allocation2 + $0x1f0] sm:$0xff]
    %v90 = vld [vmem:[#allocation2 + $0x1f8] sm:$0xff]
    %v91 = vld [vmem:[%s1] sm:$0xf]
    %v92 = vld [vmem:[%s1 + $0x4] sm:$0xf]
    %v93 = vld [vmem:[%s1 + $0x8] sm:$0xf]
    %v94 = vld [vmem:[%s1 + $0xc] sm:$0xf]
    %v95 = vld [vmem:[%s1 + $0x10] sm:$0xf]
    %v96 = vld [vmem:[%s1 + $0x14] sm:$0xf]
    %v97 = vld [vmem:[%s1 + $0x18] sm:$0xf]
    %v98 = vld [vmem:[%s1 + $0x1c] sm:$0xf]
    %v99 = vld [vmem:[%s1 + $0x20] sm:$0xf]
    %v100 = vld [vmem:[%s1 + $0x24] sm:$0xf]
    %v101 = vld [vmem:[%s1 + $0x28] sm:$0xf]
    %v102 = vld [vmem:[%s1 + $0x2c] sm:$0xf]
    %v103 = vld [vmem:[%s1 + $0x30] sm:$0xf]
    %v104 = vld [vmem:[%s1 + $0x34] sm:$0xf]
    %v105 = vld [vmem:[%s1 + $0x38] sm:$0xf]
    %v106 = vld [vmem:[%s1 + $0x3c] sm:$0xf]
    %v107 = vld [vmem:[%s1 + $0x40] sm:$0xf]
    %v108 = vld [vmem:[%s1 + $0x44] sm:$0xf]
    %v109 = vld [vmem:[%s1 + $0x48] sm:$0xf]
    %v110 = vld [vmem:[%s1 + $0x4c] sm:$0xf]
    %v111 = vld [vmem:[%s1 + $0x50] sm:$0xf]
    %v112 = vld [vmem:[%s1 + $0x54] sm:$0xf]
    %v113 = vld [vmem:[%s1 + $0x58] sm:$0xf]
    %v114 = vld [vmem:[%s1 + $0x5c] sm:$0xf]
    %v115 = vld [vmem:[%s1 + $0x60] sm:$0xf]
    %v116 = vld [vmem:[%s1 + $0x64] sm:$0xf]
    %v117 = vld [vmem:[%s1 + $0x68] sm:$0xf]
    %v118 = vld [vmem:[%s1 + $0x6c] sm:$0xf]
    %v119 = vld [vmem:[%s1 + $0x70] sm:$0xf]
    %v120 = vld [vmem:[%s1 + $0x74] sm:$0xf]
    %v121 = vld [vmem:[%s1 + $0x78] sm:$0xf]
    %v122 = vld [vmem:[%s1 + $0x7c] sm:$0xf]
    %v187 = vunpack.c.l.b16 %v27
    %v188 = vunpack.c.h.b16 %v27
    %v189 = vunpack.c.l.b16 %v28
    %v190 = vunpack.c.h.b16 %v28
    %v191 = vunpack.c.l.b16 %v29
    %v192 = vunpack.c.h.b16 %v29
    %v193 = vunpack.c.l.b16 %v30
    %v194 = vunpack.c.h.b16 %v30
    %v195 = vunpack.c.l.b16 %v31
    %v196 = vunpack.c.h.b16 %v31
    %v197 = vunpack.c.l.b16 %v32
    %v198 = vunpack.c.h.b16 %v32
    %v199 = vunpack.c.l.b16 %v33
    %v200 = vunpack.c.h.b16 %v33
    %v201 = vunpack.c.l.b16 %v34
    %v202 = vunpack.c.h.b16 %v34
    %v203 = vunpack.c.l.b16 %v35
    %v204 = vunpack.c.h.b16 %v35
    %v205 = vunpack.c.l.b16 %v36
    %v206 = vunpack.c.h.b16 %v36
    %v207 = vunpack.c.l.b16 %v37
    %v208 = vunpack.c.h.b16 %v37
    %v209 = vunpack.c.l.b16 %v38
    %v210 = vunpack.c.h.b16 %v38
    %v211 = vunpack.c.l.b16 %v39
    %v212 = vunpack.c.h.b16 %v39
    %v213 = vunpack.c.l.b16 %v40
    %v214 = vunpack.c.h.b16 %v40
    %v215 = vunpack.c.l.b16 %v41
    %v216 = vunpack.c.h.b16 %v41
    %v217 = vunpack.c.l.b16 %v42
    %v218 = vunpack.c.h.b16 %v42
    %v219 = vunpack.c.l.b16 %v43
    %v220 = vunpack.c.h.b16 %v43
    %v221 = vunpack.c.l.b16 %v44
    %v222 = vunpack.c.h.b16 %v44
    %v223 = vunpack.c.l.b16 %v45
    %v224 = vunpack.c.h.b16 %v45
    %v225 = vunpack.c.l.b16 %v46
    %v226 = vunpack.c.h.b16 %v46
    %v227 = vunpack.c.l.b16 %v47
    %v228 = vunpack.c.h.b16 %v47
    %v229 = vunpack.c.l.b16 %v48
    %v230 = vunpack.c.h.b16 %v48
    %v231 = vunpack.c.l.b16 %v49
    %v232 = vunpack.c.h.b16 %v49
    %v233 = vunpack.c.l.b16 %v50
    %v234 = vunpack.c.h.b16 %v50
    %v235 = vunpack.c.l.b16 %v51
    %v236 = vunpack.c.h.b16 %v51
    %v237 = vunpack.c.l.b16 %v52
    %v238 = vunpack.c.h.b16 %v52
    %v239 = vunpack.c.l.b16 %v53
    %v240 = vunpack.c.h.b16 %v53
    %v241 = vunpack.c.l.b16 %v54
    %v242 = vunpack.c.h.b16 %v54
    %v243 = vunpack.c.l.b16 %v55
    %v244 = vunpack.c.h.b16 %v55
    %v245 = vunpack.c.l.b16 %v56
    %v246 = vunpack.c.h.b16 %v56
    %v247 = vunpack.c.l.b16 %v57
    %v248 = vunpack.c.h.b16 %v57
    %v249 = vunpack.c.l.b16 %v58
    %v250 = vunpack.c.h.b16 %v58
    %v251 = vunpack.c.l.b16 %v59
    %v252 = vunpack.c.h.b16 %v59
    %v253 = vunpack.c.l.b16 %v60
    %v254 = vunpack.c.h.b16 %v60
    %v255 = vunpack.c.l.b16 %v61
    %v256 = vunpack.c.h.b16 %v61
    %v257 = vunpack.c.l.b16 %v62
    %v258 = vunpack.c.h.b16 %v62
    %v259 = vunpack.c.l.b16 %v63
    %v260 = vunpack.c.h.b16 %v63
    %v261 = vunpack.c.l.b16 %v64
    %v262 = vunpack.c.h.b16 %v64
    %v263 = vunpack.c.l.b16 %v65
    %v264 = vunpack.c.h.b16 %v65
    %v265 = vunpack.c.l.b16 %v66
    %v266 = vunpack.c.h.b16 %v66
    %v267 = vunpack.c.l.b16 %v67
    %v268 = vunpack.c.h.b16 %v67
    %v269 = vunpack.c.l.b16 %v68
    %v270 = vunpack.c.h.b16 %v68
    %v271 = vunpack.c.l.b16 %v69
    %v272 = vunpack.c.h.b16 %v69
    %v273 = vunpack.c.l.b16 %v70
    %v274 = vunpack.c.h.b16 %v70
    %v275 = vunpack.c.l.b16 %v71
    %v276 = vunpack.c.h.b16 %v71
    %v277 = vunpack.c.l.b16 %v72
    %v278 = vunpack.c.h.b16 %v72
    %v279 = vunpack.c.l.b16 %v73
    %v280 = vunpack.c.h.b16 %v73
    %v281 = vunpack.c.l.b16 %v74
    %v282 = vunpack.c.h.b16 %v74
    %v283 = vunpack.c.l.b16 %v75
    %v284 = vunpack.c.h.b16 %v75
    %v285 = vunpack.c.l.b16 %v76
    %v286 = vunpack.c.h.b16 %v76
    %v287 = vunpack.c.l.b16 %v77
    %v288 = vunpack.c.h.b16 %v77
    %v289 = vunpack.c.l.b16 %v78
    %v290 = vunpack.c.h.b16 %v78
    %v291 = vunpack.c.l.b16 %v79
    %v292 = vunpack.c.h.b16 %v79
    %v293 = vunpack.c.l.b16 %v80
    %v294 = vunpack.c.h.b16 %v80
    %v295 = vunpack.c.l.b16 %v81
    %v296 = vunpack.c.h.b16 %v81
    %v297 = vunpack.c.l.b16 %v82
    %v298 = vunpack.c.h.b16 %v82
    %v299 = vunpack.c.l.b16 %v83
    %v300 = vunpack.c.h.b16 %v83
    %v301 = vunpack.c.l.b16 %v84
    %v302 = vunpack.c.h.b16 %v84
    %v303 = vunpack.c.l.b16 %v85
    %v304 = vunpack.c.h.b16 %v85
    %v305 = vunpack.c.l.b16 %v86
    %v306 = vunpack.c.h.b16 %v86
    %v307 = vunpack.c.l.b16 %v87
    %v308 = vunpack.c.h.b16 %v87
    %v309 = vunpack.c.l.b16 %v88
    %v310 = vunpack.c.h.b16 %v88
    %v311 = vunpack.c.l.b16 %v89
    %v312 = vunpack.c.h.b16 %v89
    %v313 = vunpack.c.l.b16 %v90
    %v314 = vunpack.c.h.b16 %v90
    %v315 = vpack.c.b16 %v189, %v187
    %v316 = vpack.c.b16 %v190, %v188
    %v317 = vpack.c.b16 %v193, %v191
    %v318 = vpack.c.b16 %v194, %v192
    %v319 = vpack.c.b16 %v197, %v195
    %v320 = vpack.c.b16 %v198, %v196
    %v321 = vpack.c.b16 %v201, %v199
    %v322 = vpack.c.b16 %v202, %v200
    %v323 = vpack.c.b16 %v205, %v203
    %v324 = vpack.c.b16 %v206, %v204
    %v325 = vpack.c.b16 %v209, %v207
    %v326 = vpack.c.b16 %v210, %v208
    %v327 = vpack.c.b16 %v213, %v211
    %v328 = vpack.c.b16 %v214, %v212
    %v329 = vpack.c.b16 %v217, %v215
    %v330 = vpack.c.b16 %v218, %v216
    %v331 = vpack.c.b16 %v221, %v219
    %v332 = vpack.c.b16 %v222, %v220
    %v333 = vpack.c.b16 %v225, %v223
    %v334 = vpack.c.b16 %v226, %v224
    %v335 = vpack.c.b16 %v229, %v227
    %v336 = vpack.c.b16 %v230, %v228
    %v337 = vpack.c.b16 %v233, %v231
    %v338 = vpack.c.b16 %v234, %v232
    %v339 = vpack.c.b16 %v237, %v235
    %v340 = vpack.c.b16 %v238, %v236
    %v341 = vpack.c.b16 %v241, %v239
    %v342 = vpack.c.b16 %v242, %v240
    %v343 = vpack.c.b16 %v245, %v243
    %v344 = vpack.c.b16 %v246, %v244
    %v345 = vpack.c.b16 %v249, %v247
    %v346 = vpack.c.b16 %v250, %v248
    %v347 = vpack.c.b16 %v253, %v251
    %v348 = vpack.c.b16 %v254, %v252
    %v349 = vpack.c.b16 %v257, %v255
    %v350 = vpack.c.b16 %v258, %v256
    %v351 = vpack.c.b16 %v261, %v259
    %v352 = vpack.c.b16 %v262, %v260
    %v353 = vpack.c.b16 %v265, %v263
    %v354 = vpack.c.b16 %v266, %v264
    %v355 = vpack.c.b16 %v269, %v267
    %v356 = vpack.c.b16 %v270, %v268
    %v357 = vpack.c.b16 %v273, %v271
    %v358 = vpack.c.b16 %v274, %v272
    %v359 = vpack.c.b16 %v277, %v275
    %v360 = vpack.c.b16 %v278, %v276
    %v361 = vpack.c.b16 %v281, %v279
    %v362 = vpack.c.b16 %v282, %v280
    %v363 = vpack.c.b16 %v285, %v283
    %v364 = vpack.c.b16 %v286, %v284
    %v365 = vpack.c.b16 %v289, %v287
    %v366 = vpack.c.b16 %v290, %v288
    %v367 = vpack.c.b16 %v293, %v291
    %v368 = vpack.c.b16 %v294, %v292
    %v369 = vpack.c.b16 %v297, %v295
    %v370 = vpack.c.b16 %v298, %v296
    %v371 = vpack.c.b16 %v301, %v299
    %v372 = vpack.c.b16 %v302, %v300
    %v373 = vpack.c.b16 %v305, %v303
    %v374 = vpack.c.b16 %v306, %v304
    %v375 = vpack.c.b16 %v309, %v307
    %v376 = vpack.c.b16 %v310, %v308
    %v377 = vpack.c.b16 %v313, %v311
    %v378 = vpack.c.b16 %v314, %v312
    %v475 = vunpack.c.l.b16 %v91
    %v476 = vunpack.c.l.b16 %v92
    %v477 = vunpack.c.l.b16 %v93
    %v478 = vunpack.c.l.b16 %v94
    %v479 = vunpack.c.l.b16 %v95
    %v480 = vunpack.c.l.b16 %v96
    %v481 = vunpack.c.l.b16 %v97
    %v482 = vunpack.c.l.b16 %v98
    %v483 = vunpack.c.l.b16 %v99
    %v484 = vunpack.c.l.b16 %v100
    %v485 = vunpack.c.l.b16 %v101
    %v486 = vunpack.c.l.b16 %v102
    %v487 = vunpack.c.l.b16 %v103
    %v488 = vunpack.c.l.b16 %v104
    %v489 = vunpack.c.l.b16 %v105
    %v490 = vunpack.c.l.b16 %v106
    %v491 = vunpack.c.l.b16 %v107
    %v492 = vunpack.c.l.b16 %v108
    %v493 = vunpack.c.l.b16 %v109
    %v494 = vunpack.c.l.b16 %v110
    %v495 = vunpack.c.l.b16 %v111
    %v496 = vunpack.c.l.b16 %v112
    %v497 = vunpack.c.l.b16 %v113
    %v498 = vunpack.c.l.b16 %v114
    %v499 = vunpack.c.l.b16 %v115
    %v500 = vunpack.c.l.b16 %v116
    %v501 = vunpack.c.l.b16 %v117
    %v502 = vunpack.c.l.b16 %v118
    %v503 = vunpack.c.l.b16 %v119
    %v504 = vunpack.c.l.b16 %v120
    %v505 = vunpack.c.l.b16 %v121
    %v506 = vunpack.c.l.b16 %v122
    %v507 = vpack.c.b16 %v476, %v475
    %v508 = vpack.c.b16 %v478, %v477
    %v509 = vpack.c.b16 %v480, %v479
    %v510 = vpack.c.b16 %v482, %v481
    %v511 = vpack.c.b16 %v484, %v483
    %v512 = vpack.c.b16 %v486, %v485
    %v513 = vpack.c.b16 %v488, %v487
    %v514 = vpack.c.b16 %v490, %v489
    %v515 = vpack.c.b16 %v492, %v491
    %v516 = vpack.c.b16 %v494, %v493
    %v517 = vpack.c.b16 %v496, %v495
    %v518 = vpack.c.b16 %v498, %v497
    %v519 = vpack.c.b16 %v500, %v499
    %v520 = vpack.c.b16 %v502, %v501
    %v521 = vpack.c.b16 %v504, %v503
    %v522 = vpack.c.b16 %v506, %v505
    %539 = vmatprep.subr.bf16.mxu0 0
    %540 = vmatpush1.bf16.msra.mxu0 %v514
    %541 = vmatprep.subr.bf16.mxu0 0
    %542 = vmatpush1.bf16.msra.mxu0 %v513
    %543 = vmatprep.subr.bf16.mxu0 0
    %544 = vmatpush1.bf16.msra.mxu0 %v512
    %545 = vmatprep.subr.bf16.mxu0 0
    %546 = vmatpush1.bf16.msra.mxu0 %v511
    %547 = vmatprep.subr.bf16.mxu0 0
    %548 = vmatpush1.bf16.msra.mxu0 %v510
    %549 = vmatprep.subr.bf16.mxu0 0
    %550 = vmatpush1.bf16.msra.mxu0 %v509
    %551 = vmatprep.subr.bf16.mxu0 0
    %552 = vmatpush1.bf16.msra.mxu0 %v508
    %553 = vmatprep.subr.bf16.mxu0 0
    %554 = vmatpush1.bf16.msra.mxu0 %v507
    %555 = vmatprep.subr.bf16.mxu0 0
    %556 = vmatpush2.bf16.msra.mxu0 %v522
    %557 = vmatprep.subr.bf16.mxu0 0
    %558 = vmatpush2.bf16.msra.mxu0 %v521
    %559 = vmatprep.subr.bf16.mxu0 0
    %560 = vmatpush2.bf16.msra.mxu0 %v520
    %561 = vmatprep.subr.bf16.mxu0 0
    %562 = vmatpush2.bf16.msra.mxu0 %v519
    %563 = vmatprep.subr.bf16.mxu0 0
    %564 = vmatpush2.bf16.msra.mxu0 %v518
    %565 = vmatprep.subr.bf16.mxu0 0
    %566 = vmatpush2.bf16.msra.mxu0 %v517
    %567 = vmatprep.subr.bf16.mxu0 0
    %568 = vmatpush2.bf16.msra.mxu0 %v516
    %569 = vmatprep.subr.bf16.mxu0 0
    %570 = vmatpush2.bf16.msra.mxu0 %v515
    %571 = vmatprep.mubr.bf16.mxu0 %v316
    %572 = vmatmul.mubr.bf16.gmra.mxu0 %v315
    %v573 = vpop.f32.mrf.mxu0
    %v574 = vadd.f32 0.0, %v573
    %v575 = vpop.f32.mrf.mxu0
    %v576 = vpop.f32.mrf.mxu0
    %v577 = vadd.f32 0.0, %v576
    %v578 = vpop.f32.mrf.mxu0
    %579 = vmatprep.mubr.bf16.mxu0 %v318
    %580 = vmatmul.mubr.bf16.gmra.mxu0 %v317
    %v581 = vpop.f32.mrf.mxu0
    %v582 = vadd.f32 0.0, %v581
    %v583 = vpop.f32.mrf.mxu0
    %v584 = vpop.f32.mrf.mxu0
    %v585 = vadd.f32 0.0, %v584
    %v586 = vpop.f32.mrf.mxu0
    %587 = vmatprep.mubr.bf16.mxu0 %v320
    %588 = vmatmul.mubr.bf16.gmra.mxu0 %v319
    %v589 = vpop.f32.mrf.mxu0
    %v590 = vadd.f32 0.0, %v589
    %v591 = vpop.f32.mrf.mxu0
    %v592 = vpop.f32.mrf.mxu0
    %v593 = vadd.f32 0.0, %v592
    %v594 = vpop.f32.mrf.mxu0
    %595 = vmatprep.mubr.bf16.mxu0 %v322
    %596 = vmatmul.mubr.bf16.gmra.mxu0 %v321
    %v597 = vpop.f32.mrf.mxu0
    %v598 = vadd.f32 0.0, %v597
    %v599 = vpop.f32.mrf.mxu0
    %v600 = vpop.f32.mrf.mxu0
    %v601 = vadd.f32 0.0, %v600
    %v602 = vpop.f32.mrf.mxu0
    %603 = vmatprep.mubr.bf16.mxu0 %v324
    %604 = vmatmul.mubr.bf16.gmra.mxu0 %v323
    %v605 = vpop.f32.mrf.mxu0
    %v606 = vadd.f32 0.0, %v605
    %v607 = vpop.f32.mrf.mxu0
    %v608 = vpop.f32.mrf.mxu0
    %v609 = vadd.f32 0.0, %v608
    %v610 = vpop.f32.mrf.mxu0
    %611 = vmatprep.mubr.bf16.mxu0 %v326
    %612 = vmatmul.mubr.bf16.gmra.mxu0 %v325
    %v613 = vpop.f32.mrf.mxu0
    %v614 = vadd.f32 0.0, %v613
    %v615 = vpop.f32.mrf.mxu0
    %v616 = vpop.f32.mrf.mxu0
    %v617 = vadd.f32 0.0, %v616
    %v618 = vpop.f32.mrf.mxu0
    %619 = vmatprep.mubr.bf16.mxu0 %v328
    %620 = vmatmul.mubr.bf16.gmra.mxu0 %v327
    %v621 = vpop.f32.mrf.mxu0
    %v622 = vadd.f32 0.0, %v621
    %v623 = vpop.f32.mrf.mxu0
    %v624 = vpop.f32.mrf.mxu0
    %v625 = vadd.f32 0.0, %v624
    %v626 = vpop.f32.mrf.mxu0
    %627 = vmatprep.mubr.bf16.mxu0 %v330
    %628 = vmatmul.mubr.bf16.gmra.mxu0 %v329
    %v629 = vpop.f32.mrf.mxu0
    %v630 = vadd.f32 0.0, %v629
    %v631 = vpop.f32.mrf.mxu0
    %v632 = vpop.f32.mrf.mxu0
    %v633 = vadd.f32 0.0, %v632
    %v634 = vpop.f32.mrf.mxu0
    %635 = vmatprep.mubr.bf16.mxu0 %v332
    %636 = vmatmul.mubr.bf16.gmra.mxu0 %v331
    %v637 = vpop.f32.mrf.mxu0
    %v638 = vadd.f32 0.0, %v637
    %v639 = vpop.f32.mrf.mxu0
    %v640 = vpop.f32.mrf.mxu0
    %v641 = vadd.f32 0.0, %v640
    %v642 = vpop.f32.mrf.mxu0
    %643 = vmatprep.mubr.bf16.mxu0 %v334
    %644 = vmatmul.mubr.bf16.gmra.mxu0 %v333
    %v645 = vpop.f32.mrf.mxu0
    %v646 = vadd.f32 0.0, %v645
    %v647 = vpop.f32.mrf.mxu0
    %v648 = vpop.f32.mrf.mxu0
    %v649 = vadd.f32 0.0, %v648
    %v650 = vpop.f32.mrf.mxu0
    %651 = vmatprep.mubr.bf16.mxu0 %v336
    %652 = vmatmul.mubr.bf16.gmra.mxu0 %v335
    %v653 = vpop.f32.mrf.mxu0
    %v654 = vadd.f32 0.0, %v653
    %v655 = vpop.f32.mrf.mxu0
    %v656 = vpop.f32.mrf.mxu0
    %v657 = vadd.f32 0.0, %v656
    %v658 = vpop.f32.mrf.mxu0
    %659 = vmatprep.mubr.bf16.mxu0 %v338
    %660 = vmatmul.mubr.bf16.gmra.mxu0 %v337
    %v661 = vpop.f32.mrf.mxu0
    %v662 = vadd.f32 0.0, %v661
    %v663 = vpop.f32.mrf.mxu0
    %v664 = vpop.f32.mrf.mxu0
    %v665 = vadd.f32 0.0, %v664
    %v666 = vpop.f32.mrf.mxu0
    %667 = vmatprep.mubr.bf16.mxu0 %v340
    %668 = vmatmul.mubr.bf16.gmra.mxu0 %v339
    %v669 = vpop.f32.mrf.mxu0
    %v670 = vadd.f32 0.0, %v669
    %v671 = vpop.f32.mrf.mxu0
    %v672 = vpop.f32.mrf.mxu0
    %v673 = vadd.f32 0.0, %v672
    %v674 = vpop.f32.mrf.mxu0
    %675 = vmatprep.mubr.bf16.mxu0 %v342
    %676 = vmatmul.mubr.bf16.gmra.mxu0 %v341
    %v677 = vpop.f32.mrf.mxu0
    %v678 = vadd.f32 0.0, %v677
    %v679 = vpop.f32.mrf.mxu0
    %v680 = vpop.f32.mrf.mxu0
    %v681 = vadd.f32 0.0, %v680
    %v682 = vpop.f32.mrf.mxu0
    %683 = vmatprep.mubr.bf16.mxu0 %v344
    %684 = vmatmul.mubr.bf16.gmra.mxu0 %v343
    %v685 = vpop.f32.mrf.mxu0
    %v686 = vadd.f32 0.0, %v685
    %v687 = vpop.f32.mrf.mxu0
    %v688 = vpop.f32.mrf.mxu0
    %v689 = vadd.f32 0.0, %v688
    %v690 = vpop.f32.mrf.mxu0
    %691 = vmatprep.mubr.bf16.mxu0 %v346
    %692 = vmatmul.mubr.bf16.gmra.mxu0 %v345
    %v693 = vpop.f32.mrf.mxu0
    %v694 = vadd.f32 0.0, %v693
    %v695 = vpop.f32.mrf.mxu0
    %v696 = vpop.f32.mrf.mxu0
    %v697 = vadd.f32 0.0, %v696
    %v698 = vpop.f32.mrf.mxu0
    %699 = vmatprep.mubr.bf16.mxu0 %v348
    %700 = vmatmul.mubr.bf16.gmra.mxu0 %v347
    %v701 = vpop.f32.mrf.mxu0
    %v702 = vadd.f32 0.0, %v701
    %v703 = vpop.f32.mrf.mxu0
    %v704 = vpop.f32.mrf.mxu0
    %v705 = vadd.f32 0.0, %v704
    %v706 = vpop.f32.mrf.mxu0
    %707 = vmatprep.mubr.bf16.mxu0 %v350
    %708 = vmatmul.mubr.bf16.gmra.mxu0 %v349
    %v709 = vpop.f32.mrf.mxu0
    %v710 = vadd.f32 0.0, %v709
    %v711 = vpop.f32.mrf.mxu0
    %v712 = vpop.f32.mrf.mxu0
    %v713 = vadd.f32 0.0, %v712
    %v714 = vpop.f32.mrf.mxu0
    %715 = vmatprep.mubr.bf16.mxu0 %v352
    %716 = vmatmul.mubr.bf16.gmra.mxu0 %v351
    %v717 = vpop.f32.mrf.mxu0
    %v718 = vadd.f32 0.0, %v717
    %v719 = vpop.f32.mrf.mxu0
    %v720 = vpop.f32.mrf.mxu0
    %v721 = vadd.f32 0.0, %v720
    %v722 = vpop.f32.mrf.mxu0
    %723 = vmatprep.mubr.bf16.mxu0 %v354
    %724 = vmatmul.mubr.bf16.gmra.mxu0 %v353
    %v725 = vpop.f32.mrf.mxu0
    %v726 = vadd.f32 0.0, %v725
    %v727 = vpop.f32.mrf.mxu0
    %v728 = vpop.f32.mrf.mxu0
    %v729 = vadd.f32 0.0, %v728
    %v730 = vpop.f32.mrf.mxu0
    %731 = vmatprep.mubr.bf16.mxu0 %v356
    %732 = vmatmul.mubr.bf16.gmra.mxu0 %v355
    %v733 = vpop.f32.mrf.mxu0
    %v734 = vadd.f32 0.0, %v733
    %v735 = vpop.f32.mrf.mxu0
    %v736 = vpop.f32.mrf.mxu0
    %v737 = vadd.f32 0.0, %v736
    %v738 = vpop.f32.mrf.mxu0
    %739 = vmatprep.mubr.bf16.mxu0 %v358
    %740 = vmatmul.mubr.bf16.gmra.mxu0 %v357
    %v741 = vpop.f32.mrf.mxu0
    %v742 = vadd.f32 0.0, %v741
    %v743 = vpop.f32.mrf.mxu0
    %v744 = vpop.f32.mrf.mxu0
    %v745 = vadd.f32 0.0, %v744
    %v746 = vpop.f32.mrf.mxu0
    %747 = vmatprep.mubr.bf16.mxu0 %v360
    %748 = vmatmul.mubr.bf16.gmra.mxu0 %v359
    %v749 = vpop.f32.mrf.mxu0
    %v750 = vadd.f32 0.0, %v749
    %v751 = vpop.f32.mrf.mxu0
    %v752 = vpop.f32.mrf.mxu0
    %v753 = vadd.f32 0.0, %v752
    %v754 = vpop.f32.mrf.mxu0
    %755 = vmatprep.mubr.bf16.mxu0 %v362
    %756 = vmatmul.mubr.bf16.gmra.mxu0 %v361
    %v757 = vpop.f32.mrf.mxu0
    %v758 = vadd.f32 0.0, %v757
    %v759 = vpop.f32.mrf.mxu0
    %v760 = vpop.f32.mrf.mxu0
    %v761 = vadd.f32 0.0, %v760
    %v762 = vpop.f32.mrf.mxu0
    %763 = vmatprep.mubr.bf16.mxu0 %v364
    %764 = vmatmul.mubr.bf16.gmra.mxu0 %v363
    %v765 = vpop.f32.mrf.mxu0
    %v766 = vadd.f32 0.0, %v765
    %v767 = vpop.f32.mrf.mxu0
    %v768 = vpop.f32.mrf.mxu0
    %v769 = vadd.f32 0.0, %v768
    %v770 = vpop.f32.mrf.mxu0
    %771 = vmatprep.mubr.bf16.mxu0 %v366
    %772 = vmatmul.mubr.bf16.gmra.mxu0 %v365
    %v773 = vpop.f32.mrf.mxu0
    %v774 = vadd.f32 0.0, %v773
    %v775 = vpop.f32.mrf.mxu0
    %v776 = vpop.f32.mrf.mxu0
    %v777 = vadd.f32 0.0, %v776
    %v778 = vpop.f32.mrf.mxu0
    %779 = vmatprep.mubr.bf16.mxu0 %v368
    %780 = vmatmul.mubr.bf16.gmra.mxu0 %v367
    %v781 = vpop.f32.mrf.mxu0
    %v782 = vadd.f32 0.0, %v781
    %v783 = vpop.f32.mrf.mxu0
    %v784 = vpop.f32.mrf.mxu0
    %v785 = vadd.f32 0.0, %v784
    %v786 = vpop.f32.mrf.mxu0
    %787 = vmatprep.mubr.bf16.mxu0 %v370
    %788 = vmatmul.mubr.bf16.gmra.mxu0 %v369
    %v789 = vpop.f32.mrf.mxu0
    %v790 = vadd.f32 0.0, %v789
    %v791 = vpop.f32.mrf.mxu0
    %v792 = vpop.f32.mrf.mxu0
    %v793 = vadd.f32 0.0, %v792
    %v794 = vpop.f32.mrf.mxu0
    %795 = vmatprep.mubr.bf16.mxu0 %v372
    %796 = vmatmul.mubr.bf16.gmra.mxu0 %v371
    %v797 = vpop.f32.mrf.mxu0
    %v798 = vadd.f32 0.0, %v797
    %v799 = vpop.f32.mrf.mxu0
    %v800 = vpop.f32.mrf.mxu0
    %v801 = vadd.f32 0.0, %v800
    %v802 = vpop.f32.mrf.mxu0
    %803 = vmatprep.mubr.bf16.mxu0 %v374
    %804 = vmatmul.mubr.bf16.gmra.mxu0 %v373
    %v805 = vpop.f32.mrf.mxu0
    %v806 = vadd.f32 0.0, %v805
    %v807 = vpop.f32.mrf.mxu0
    %v808 = vpop.f32.mrf.mxu0
    %v809 = vadd.f32 0.0, %v808
    %v810 = vpop.f32.mrf.mxu0
    %811 = vmatprep.mubr.bf16.mxu0 %v376
    %812 = vmatmul.mubr.bf16.gmra.mxu0 %v375
    %v813 = vpop.f32.mrf.mxu0
    %v814 = vadd.f32 0.0, %v813
    %v815 = vpop.f32.mrf.mxu0
    %v816 = vpop.f32.mrf.mxu0
    %v817 = vadd.f32 0.0, %v816
    %v818 = vpop.f32.mrf.mxu0
    %819 = vmatprep.mubr.bf16.mxu0 %v378
    %820 = vmatmul.mubr.bf16.gmra.mxu0 %v377
    %v821 = vpop.f32.mrf.mxu0
    %v822 = vadd.f32 0.0, %v821
    %v823 = vpop.f32.mrf.mxu0
    %v824 = vpop.f32.mrf.mxu0
    %v825 = vadd.f32 0.0, %v824
    %v826 = vpop.f32.mrf.mxu0
    %827 = vdwg.mxu0
    %v828 = vmax.f32 %v574, 0.0
    %v829 = vmax.f32 %v577, 0.0
    %v830 = vmax.f32 %v582, 0.0
    %v831 = vmax.f32 %v585, 0.0
    %v832 = vmax.f32 %v590, 0.0
    %v833 = vmax.f32 %v593, 0.0
    %v834 = vmax.f32 %v598, 0.0
    %v835 = vmax.f32 %v601, 0.0
    %v836 = vmax.f32 %v606, 0.0
    %v837 = vmax.f32 %v609, 0.0
    %v838 = vmax.f32 %v614, 0.0
    %v839 = vmax.f32 %v617, 0.0
    %v840 = vmax.f32 %v622, 0.0
    %v841 = vmax.f32 %v625, 0.0
    %v842 = vmax.f32 %v630, 0.0
    %v843 = vmax.f32 %v633, 0.0
    %v844 = vmax.f32 %v638, 0.0
    %v845 = vmax.f32 %v641, 0.0
    %v846 = vmax.f32 %v646, 0.0
    %v847 = vmax.f32 %v649, 0.0
    %v848 = vmax.f32 %v654, 0.0
    %v849 = vmax.f32 %v657, 0.0
    %v850 = vmax.f32 %v662, 0.0
    %v851 = vmax.f32 %v665, 0.0
    %v852 = vmax.f32 %v670, 0.0
    %v853 = vmax.f32 %v673, 0.0
    %v854 = vmax.f32 %v678, 0.0
    %v855 = vmax.f32 %v681, 0.0
    %v856 = vmax.f32 %v686, 0.0
    %v857 = vmax.f32 %v689, 0.0
    %v858 = vmax.f32 %v694, 0.0
    %v859 = vmax.f32 %v697, 0.0
    %v860 = vmax.f32 %v702, 0.0
    %v861 = vmax.f32 %v705, 0.0
    %v862 = vmax.f32 %v710, 0.0
    %v863 = vmax.f32 %v713, 0.0
    %v864 = vmax.f32 %v718, 0.0
    %v865 = vmax.f32 %v721, 0.0
    %v866 = vmax.f32 %v726, 0.0
    %v867 = vmax.f32 %v729, 0.0
    %v868 = vmax.f32 %v734, 0.0
    %v869 = vmax.f32 %v737, 0.0
    %v870 = vmax.f32 %v742, 0.0
    %v871 = vmax.f32 %v745, 0.0
    %v872 = vmax.f32 %v750, 0.0
    %v873 = vmax.f32 %v753, 0.0
    %v874 = vmax.f32 %v758, 0.0
    %v875 = vmax.f32 %v761, 0.0
    %v876 = vmax.f32 %v766, 0.0
    %v877 = vmax.f32 %v769, 0.0
    %v878 = vmax.f32 %v774, 0.0
    %v879 = vmax.f32 %v777, 0.0
    %v880 = vmax.f32 %v782, 0.0
    %v881 = vmax.f32 %v785, 0.0
    %v882 = vmax.f32 %v790, 0.0
    %v883 = vmax.f32 %v793, 0.0
    %v884 = vmax.f32 %v798, 0.0
    %v885 = vmax.f32 %v801, 0.0
    %v886 = vmax.f32 %v806, 0.0
    %v887 = vmax.f32 %v809, 0.0
    %v888 = vmax.f32 %v814, 0.0
    %v889 = vmax.f32 %v817, 0.0
    %v890 = vmax.f32 %v822, 0.0
    %v891 = vmax.f32 %v825, 0.0
    %vm892 = vcmask 523264
    %v893 = vsel %vm892, %v828, 0.0
    %v894 = vsel %vm892, %v829, 0.0
    %v895 = vadd.f32 %v893, %v894
    %v896 = vsel %vm892, %v830, 0.0
    %v897 = vadd.f32 %v895, %v896
    %v898 = vsel %vm892, %v831, 0.0
    %v899 = vadd.f32 %v897, %v898
    %v900 = vsel %vm892, %v832, 0.0
    %v901 = vadd.f32 %v899, %v900
    %v902 = vsel %vm892, %v833, 0.0
    %v903 = vadd.f32 %v901, %v902
    %v904 = vsel %vm892, %v834, 0.0
    %v905 = vadd.f32 %v903, %v904
    %v906 = vsel %vm892, %v835, 0.0
    %v907 = vadd.f32 %v905, %v906
    %v908 = vrot.slane %v907, 4
    %v909 = vadd.f32 %v907, %v908
    %v910 = vrot.slane %v909, 2
    %v911 = vadd.f32 %v909, %v910
    %v912 = vrot.slane %v911, 1
    %v913 = vadd.f32 %v911, %v912
    %v914 = vsel %vm892, %v836, 0.0
    %v915 = vsel %vm892, %v837, 0.0
    %v916 = vadd.f32 %v914, %v915
    %v917 = vsel %vm892, %v838, 0.0
    %v918 = vadd.f32 %v916, %v917
    %v919 = vsel %vm892, %v839, 0.0
    %v920 = vadd.f32 %v918, %v919
    %v921 = vsel %vm892, %v840, 0.0
    %v922 = vadd.f32 %v920, %v921
    %v923 = vsel %vm892, %v841, 0.0
    %v924 = vadd.f32 %v922, %v923
    %v925 = vsel %vm892, %v842, 0.0
    %v926 = vadd.f32 %v924, %v925
    %v927 = vsel %vm892, %v843, 0.0
    %v928 = vadd.f32 %v926, %v927
    %v929 = vrot.slane %v928, 4
    %v930 = vadd.f32 %v928, %v929
    %v931 = vrot.slane %v930, 2
    %v932 = vadd.f32 %v930, %v931
    %v933 = vrot.slane %v932, 1
    %v934 = vadd.f32 %v932, %v933
    %v935 = vsel %vm892, %v844, 0.0
    %v936 = vsel %vm892, %v845, 0.0
    %v937 = vadd.f32 %v935, %v936
    %v938 = vsel %vm892, %v846, 0.0
    %v939 = vadd.f32 %v937, %v938
    %v940 = vsel %vm892, %v847, 0.0
    %v941 = vadd.f32 %v939, %v940
    %v942 = vsel %vm892, %v848, 0.0
    %v943 = vadd.f32 %v941, %v942
    %v944 = vsel %vm892, %v849, 0.0
    %v945 = vadd.f32 %v943, %v944
    %v946 = vsel %vm892, %v850, 0.0
    %v947 = vadd.f32 %v945, %v946
    %v948 = vsel %vm892, %v851, 0.0
    %v949 = vadd.f32 %v947, %v948
    %v950 = vrot.slane %v949, 4
    %v951 = vadd.f32 %v949, %v950
    %v952 = vrot.slane %v951, 2
    %v953 = vadd.f32 %v951, %v952
    %v954 = vrot.slane %v953, 1
    %v955 = vadd.f32 %v953, %v954
    %v956 = vsel %vm892, %v852, 0.0
    %v957 = vsel %vm892, %v853, 0.0
    %v958 = vadd.f32 %v956, %v957
    %v959 = vsel %vm892, %v854, 0.0
    %v960 = vadd.f32 %v958, %v959
    %v961 = vsel %vm892, %v855, 0.0
    %v962 = vadd.f32 %v960, %v961
    %v963 = vsel %vm892, %v856, 0.0
    %v964 = vadd.f32 %v962, %v963
    %v965 = vsel %vm892, %v857, 0.0
    %v966 = vadd.f32 %v964, %v965
    %v967 = vsel %vm892, %v858, 0.0
    %v968 = vadd.f32 %v966, %v967
    %v969 = vsel %vm892, %v859, 0.0
    %v970 = vadd.f32 %v968, %v969
    %v971 = vrot.slane %v970, 4
    %v972 = vadd.f32 %v970, %v971
    %v973 = vrot.slane %v972, 2
    %v974 = vadd.f32 %v972, %v973
    %v975 = vrot.slane %v974, 1
    %v976 = vadd.f32 %v974, %v975
    %v977 = vsel %vm892, %v860, 0.0
    %v978 = vsel %vm892, %v861, 0.0
    %v979 = vadd.f32 %v977, %v978
    %v980 = vsel %vm892, %v862, 0.0
    %v981 = vadd.f32 %v979, %v980
    %v982 = vsel %vm892, %v863, 0.0
    %v983 = vadd.f32 %v981, %v982
    %v984 = vsel %vm892, %v864, 0.0
    %v985 = vadd.f32 %v983, %v984
    %v986 = vsel %vm892, %v865, 0.0
    %v987 = vadd.f32 %v985, %v986
    %v988 = vsel %vm892, %v866, 0.0
    %v989 = vadd.f32 %v987, %v988
    %v990 = vsel %vm892, %v867, 0.0
    %v991 = vadd.f32 %v989, %v990
    %v992 = vrot.slane %v991, 4
    %v993 = vadd.f32 %v991, %v992
    %v994 = vrot.slane %v993, 2
    %v995 = vadd.f32 %v993, %v994
    %v996 = vrot.slane %v995, 1
    %v997 = vadd.f32 %v995, %v996
    %v998 = vsel %vm892, %v868, 0.0
    %v999 = vsel %vm892, %v869, 0.0
    %v1000 = vadd.f32 %v998, %v999
    %v1001 = vsel %vm892, %v870, 0.0
    %v1002 = vadd.f32 %v1000, %v1001
    %v1003 = vsel %vm892, %v871, 0.0
    %v1004 = vadd.f32 %v1002, %v1003
    %v1005 = vsel %vm892, %v872, 0.0
    %v1006 = vadd.f32 %v1004, %v1005
    %v1007 = vsel %vm892, %v873, 0.0
    %v1008 = vadd.f32 %v1006, %v1007
    %v1009 = vsel %vm892, %v874, 0.0
    %v1010 = vadd.f32 %v1008, %v1009
    %v1011 = vsel %vm892, %v875, 0.0
    %v1012 = vadd.f32 %v1010, %v1011
    %v1013 = vrot.slane %v1012, 4
    %v1014 = vadd.f32 %v1012, %v1013
    %v1015 = vrot.slane %v1014, 2
    %v1016 = vadd.f32 %v1014, %v1015
    %v1017 = vrot.slane %v1016, 1
    %v1018 = vadd.f32 %v1016, %v1017
    %v1019 = vsel %vm892, %v876, 0.0
    %v1020 = vsel %vm892, %v877, 0.0
    %v1021 = vadd.f32 %v1019, %v1020
    %v1022 = vsel %vm892, %v878, 0.0
    %v1023 = vadd.f32 %v1021, %v1022
    %v1024 = vsel %vm892, %v879, 0.0
    %v1025 = vadd.f32 %v1023, %v1024
    %v1026 = vsel %vm892, %v880, 0.0
    %v1027 = vadd.f32 %v1025, %v1026
    %v1028 = vsel %vm892, %v881, 0.0
    %v1029 = vadd.f32 %v1027, %v1028
    %v1030 = vsel %vm892, %v882, 0.0
    %v1031 = vadd.f32 %v1029, %v1030
    %v1032 = vsel %vm892, %v883, 0.0
    %v1033 = vadd.f32 %v1031, %v1032
    %v1034 = vrot.slane %v1033, 4
    %v1035 = vadd.f32 %v1033, %v1034
    %v1036 = vrot.slane %v1035, 2
    %v1037 = vadd.f32 %v1035, %v1036
    %v1038 = vrot.slane %v1037, 1
    %v1039 = vadd.f32 %v1037, %v1038
    %v1040 = vsel %vm892, %v884, 0.0
    %v1041 = vsel %vm892, %v885, 0.0
    %v1042 = vadd.f32 %v1040, %v1041
    %v1043 = vsel %vm892, %v886, 0.0
    %v1044 = vadd.f32 %v1042, %v1043
    %v1045 = vsel %vm892, %v887, 0.0
    %v1046 = vadd.f32 %v1044, %v1045
    %v1047 = vsel %vm892, %v888, 0.0
    %v1048 = vadd.f32 %v1046, %v1047
    %v1049 = vsel %vm892, %v889, 0.0
    %v1050 = vadd.f32 %v1048, %v1049
    %v1051 = vsel %vm892, %v890, 0.0
    %v1052 = vadd.f32 %v1050, %v1051
    %v1053 = vsel %vm892, %v891, 0.0
    %v1054 = vadd.f32 %v1052, %v1053
    %v1055 = vrot.slane %v1054, 4
    %v1056 = vadd.f32 %v1054, %v1055
    %v1057 = vrot.slane %v1056, 2
    %v1058 = vadd.f32 %v1056, %v1057
    %v1059 = vrot.slane %v1058, 1
    %v1060 = vadd.f32 %v1058, %v1059
    %v1061 = vmul.f32 %v913, 0.015625
    %v1062 = vmul.f32 %v934, 0.015625
    %v1063 = vmul.f32 %v955, 0.015625
    %v1064 = vmul.f32 %v976, 0.015625
    %v1065 = vmul.f32 %v997, 0.015625
    %v1066 = vmul.f32 %v1018, 0.015625
    %v1067 = vmul.f32 %v1039, 0.015625
    %v1068 = vmul.f32 %v1060, 0.015625
    %vm1077 = vcmask 1041409
    %v1078 = vsel %vm1077, %v1062, %v1061
    %vm1079 = vcmask 1042434
    %v1080 = vsel %vm1079, %v1063, %v1078
    %vm1081 = vcmask 1043459
    %v1082 = vsel %vm1081, %v1064, %v1080
    %vm1083 = vcmask 1044484
    %v1084 = vsel %vm1083, %v1065, %v1082
    %vm1085 = vcmask 1045509
    %v1086 = vsel %vm1085, %v1066, %v1084
    %vm1087 = vcmask 1046534
    %v1088 = vsel %vm1087, %v1067, %v1086
    %vm1089 = vcmask 1047559
    %v1090 = vsel %vm1089, %v1068, %v1088
    %1092 = vst.msk [vmem:[#allocation5] sm:$0xff] %vm892, %v1090
    // Predicated region
    $region14: #{tpu_custom_call.1} parent=1 // pred_check
      _
    $region15: #{tpu_custom_call.1} parent=1 // pred_check_branch
      %1094 = sbr.rel (0) target = $region17
    $region16: #{tpu_custom_call.1} parent=1 // pred_region
      %s1096 = ssub.s32 128, 128
      %1097 = vsyncadd [#allocation4], %s1096
      %s1099 = sshll.u32 [#allocation5], 4
      %s1100 = int_to_ptr.vmem [resolvable:$true] %s1099
      %1102 = dma.vmem_to_hbm [thread:$0]  %s1100, 128, %s2, [#allocation4]
    $region17: #{tpu_custom_call.1} parent=1 // pred_fallthru
      _
    // Predicated region
    $region18: #{tpu_custom_call.1} parent=1 // pred_check
      _
    $region19: #{tpu_custom_call.1} parent=1 // pred_check_branch
      %1104 = sbr.rel (0) target = $region21
    $region20: #{tpu_custom_call.1} parent=1 // pred_region
      %1105 = dma.done [#allocation4], 128
    $region21: #{tpu_custom_call.1} parent=1 // pred_fallthru
      _
    %1106 = vsyncpa [#allocation3], 1
    %1107 = vsyncpa [#allocation4], 1

</llo_original>
